<compile_context>
chip_gen: v6e
topology: v6e:2x2x1
jax: 0.10.0
libtpu: 0.0.40
codegen_flags: <defaults>
</compile_context>

<pallas_src>
from functools import partial

import numpy as np
import jax
import jax.numpy as jnp
from jax import lax
from jax.experimental import pallas as pl
from jax.experimental.pallas import tpu as pltpu


# ----------------------------- static configuration ------------------------------
N, C, H, W = 2, 4, 16, 16            # batch, channels (power of 2), spatial
HW = H * W                           # flattened spatial -> 256 lanes (2 full lane tiles)
NC = N * C                           # packed sublane rows (channel-major: row = c*N + n)
KSIZE = 3
STRIDE = 1                           # stride must be 1 so spatial dims are preserved
NUM_BUTTERFLIES = C.bit_length() - 1   # log2(C)
NUM_CONVS = 2 * NUM_BUTTERFLIES
DILATIONS = (1, 3)                   # even convs: dil 1, odd convs: dil 3

assert C & (C - 1) == 0, "C must be a power of two (butterfly requirement)"
assert STRIDE == 1, "stride must be 1 (residual requires preserved spatial dims)"


def generate_masks(num):
    """Same as the PyTorch helper, but returns plain Python lists (static)."""
    masks = []
    for i in range(num):
        now = list(range(2 ** num))
        length = 2 ** (num - i)
        for j in range(2 ** i):
            tmp = now[j * length:j * length + length // 2]
            now[j * length:j * length + length // 2] = \
                now[j * length + length // 2:j * length + length]
            now[j * length + length // 2:j * length + length] = tmp
        masks.append(now)
    return masks


MASKS = generate_masks(NUM_BUTTERFLIES)
# Butterfly masks are XOR permutations: MASKS[i][c] == c ^ (C >> (i + 1)).  Verify.
for _i, _m in enumerate(MASKS):
    _s = C >> (_i + 1)
    assert _m == [c ^ _s for c in range(C)], "butterfly mask is not an XOR permutation"

# Static "same"-padding validity masks per (conv, tap) over the flattened HxW positions.
# A lane roll wraps across row/image boundaries; multiplying by a pre-zeroed weight slab
# kills those wrapped contributions, exactly reproducing zero padding.
_hh = np.arange(HW) // W
_ww = np.arange(HW) % W
VALID_MASKS = np.zeros((NUM_CONVS * KSIZE * KSIZE, HW), np.float32)
for _conv in range(NUM_CONVS):
    _d = DILATIONS[_conv % 2]
    for _i in range(KSIZE):
        for _j in range(KSIZE):
            _oh, _ow = (_i - 1) * _d, (_j - 1) * _d
            _ok = ((_hh + _oh >= 0) & (_hh + _oh < H)
                   & (_ww + _ow >= 0) & (_ww + _ow < W))
            VALID_MASKS[_conv * 9 + _i * 3 + _j] = _ok.astype(np.float32)


# ----------------------------------- kernel ---------------------------------------
def butterfly_kernel(x_ref, w_ref, b_ref, o_ref):
    # x_ref : (NC, HW)              VMEM -- packed activations, row = c*N + n, lanes = HxW
    # w_ref : (NUM_CONVS*9, NC, HW) VMEM -- per-(conv, tap) weights, boundary mask baked in
    # b_ref : (NUM_CONVS, NC, 1)    VMEM -- per-conv per-row biases
    # o_ref : (NC, HW)              VMEM -- output (lane-dense, unmasked 256-wide stores)
    x = x_ref[...]                                            # (NC, HW) f32

    def shifted(v, off):
        # result[:, t] = v[:, (t + off) mod HW]   (wrap handled by the pre-zeroed weights)
        if off == 0:
            return v
        return pltpu.roll(v, (-off) % HW, 1)                  # XLU lane rotation

    def dwconv_relu(v, conv_idx, dil):
        # Depthwise 3x3 conv (stride 1, zero pad = dil, dilation = dil) + bias + ReLU.
        # Each tap: one XLU roll + one VPU multiply by a pre-broadcast, pre-masked slab.
        terms = []
        for i in range(KSIZE):
            for j in range(KSIZE):
                off = ((i - 1) * W + (j - 1)) * dil
                wt = w_ref[conv_idx * KSIZE * KSIZE + i * KSIZE + j]   # (NC, HW)
                terms.append(shifted(v, off) * wt)
        # pairwise tree reduction (ILP) instead of a serial 9-term add chain
        while len(terms) > 1:
            nxt = [terms[k] + terms[k + 1] for k in range(0, len(terms) - 1, 2)]
            if len(terms) % 2:
                nxt.append(terms[-1])
            terms = nxt
        return jnp.maximum(terms[0] + b_ref[conv_idx], 0.0)

    # Sublane index, only needed when a stage's XOR shift is not NC/2 (pure-roll case).
    need_select = any((C >> (s + 1)) * N != NC // 2 for s in range(NUM_BUTTERFLIES))
    row_idx = lax.broadcasted_iota(jnp.int32, (NC, HW), 0) if need_select else None

    def xor_permute(v, k):
        # result[r, :] = v[r ^ k, :] with k a power of two (butterfly channel permutation
        # expressed in packed rows).  Pure sublane roll when k == NC/2; otherwise two
        # sublane rolls + one select.  All XLU/VPU, nothing on the MXU.
        if k == NC // 2:
            return pltpu.roll(v, k, 0)
        up = pltpu.roll(v, (NC - k) % NC, 0)   # result[r] = v[r + k]
        dn = pltpu.roll(v, k, 0)               # result[r] = v[r - k]
        return jnp.where((row_idx & k) == 0, up, dn)

    now = x
    for step in range(NUM_BUTTERFLIES):
        k_rows = (C >> (step + 1)) * N         # channel XOR shift, scaled to packed rows
        permuted = xor_permute(now, k_rows)    # torch.index_select(now, 1, masks[step])
        now = dwconv_relu(now, 2 * step, 1) + dwconv_relu(permuted, 2 * step + 1, 3)

    # residual connection (head = tail = Identity)
    o_ref[...] = now + x


# ---------------------------------- wrapper ---------------------------------------
@jax.jit
def butterfly_conv_v2(x, weights, biases):
    # Pack activations channel-major onto sublanes: (N,C,H,W) -> (C,N,H,W) -> (C*N, H*W).
    x2 = jnp.transpose(x.astype(jnp.float32), (1, 0, 2, 3)).reshape(NC, HW)

    # Pre-broadcast per-tap weight slabs with the boundary mask baked in:
    #   w_pre[conv*9 + i*3 + j, c*N + n, hw] = weights[conv, c, i, j] * valid(conv, tap, hw)
    w_taps = jnp.transpose(weights.astype(jnp.float32), (0, 2, 3, 1)) \
                .reshape(NUM_CONVS * KSIZE * KSIZE, C)                 # (36, C)
    w_rows = jnp.repeat(w_taps, N, axis=1)                             # (36, NC)
    w_pre = w_rows[:, :, None] * jnp.asarray(VALID_MASKS)[:, None, :]  # (36, NC, HW)

    # Per-row biases: b_rows[conv, c*N + n, 0] = biases[conv, c]
    b_rows = jnp.repeat(biases.astype(jnp.float32), N, axis=1)[:, :, None]  # (NUM_CONVS, NC, 1)

    flops = NUM_CONVS * (2 * KSIZE * KSIZE + 2) * NC * HW
    bytes_accessed = 4 * (2 * NC * HW + w_pre.size + b_rows.size)

    out = pl.pallas_call(
        butterfly_kernel,
        out_shape=jax.ShapeDtypeStruct((NC, HW), jnp.float32),
        cost_estimate=pl.CostEstimate(
            flops=flops, transcendentals=0, bytes_accessed=bytes_accessed),
    )(x2, w_pre, b_rows)

    # Unpack back to (N, C, H, W).
    return jnp.transpose(out.reshape(C, N, H, W), (1, 0, 2, 3))


# --------------------------- pure-JAX reference (check) ----------------------------
def reference(x, weights, biases):
    def dwconv_relu(v, w, b, dil):
        pad = (KSIZE - 1) // 2 * dil
        y = lax.conv_general_dilated(
            v, w.reshape(C, 1, KSIZE, KSIZE),
            window_strides=(STRIDE, STRIDE),
            padding=[(pad, pad), (pad, pad)],
            rhs_dilation=(dil, dil),
            dimension_numbers=('NCHW', 'OIHW', 'NCHW'),
            feature_group_count=C)
        return jnp.maximum(y + b.reshape(1, C, 1, 1), 0.0)

    now = x
    for i in range(NUM_BUTTERFLIES):
        perm = jnp.asarray(MASKS[i], dtype=jnp.int32)
        now = dwconv_relu(now, weights[2 * i], biases[2 * i], 1) + \
              dwconv_relu(jnp.take(now, perm, axis=1),
                          weights[2 * i + 1], biases[2 * i + 1], 3)
    return now + x


# ------------------------------------ main -----------------------------------------
if __name__ == "__main__":
    key = jax.random.PRNGKey(0)
    kx, kw, kb = jax.random.split(key, 3)
    x = jax.random.normal(kx, (N, C, H, W), jnp.float32)
    weights = jax.random.normal(kw, (NUM_CONVS, C, KSIZE, KSIZE), jnp.float32) * 0.2
    biases = jax.random.normal(kb, (NUM_CONVS, C), jnp.float32) * 0.1

    out = jax.block_until_ready(butterfly_conv_v2(x, weights, biases))
    ref = jax.block_until_ready(reference(x, weights, biases))

    assert out.shape == (N, C, H, W)
    max_err = float(jnp.max(jnp.abs(out - ref)))
    assert jnp.allclose(out, ref, atol=1e-4, rtol=1e-4), f"max_err={max_err}"
    print("KERNEL_OK")
</pallas_src>

<mosaic_0001>
module attributes {stable_mosaic.version = 11 : i64} {
  func.func @butterfly_kernel(%arg0: memref<8x256xf32, #tpu.memory_space<vmem>>, %arg1: memref<36x8x256xf32, #tpu.memory_space<vmem>>, %arg2: memref<4x8x1xf32, #tpu.memory_space<vmem>>, %arg3: memref<8x256xf32, #tpu.memory_space<vmem>>) attributes {dimension_semantics = [], scalar_prefetch = 0 : i64, scratch_operands = 0 : i64, tpu.core_type = #tpu.core_type<tc>} {
    %c0 = arith.constant 0 : index
    %c0_0 = arith.constant 0 : index
    %0 = vector.load %arg0[%c0, %c0_0] : memref<8x256xf32, #tpu.memory_space<vmem>>, vector<8x256xf32>
    %1 = tpu.iota {dimensions = array<i32: 0>} : vector<8x256xi32>
    %c4_i32 = arith.constant 4 : i32
    %2 = tpu.dynamic_rotate %0 by %c4_i32 dim 0 : vector<8x256xf32>, i32 -> vector<8x256xf32>
    %c0_1 = arith.constant 0 : index
    %c0_2 = arith.constant 0 : index
    %c0_3 = arith.constant 0 : index
    %3 = vector.load %arg1[%c0_1, %c0_2, %c0_3] : memref<36x8x256xf32, #tpu.memory_space<vmem>>, vector<1x8x256xf32>
    %4 = vector.shape_cast %3 : vector<1x8x256xf32> to vector<8x256xf32>
    %c17_i32 = arith.constant 17 : i32
    %5 = tpu.dynamic_rotate %0 by %c17_i32 dim 1 : vector<8x256xf32>, i32 -> vector<8x256xf32>
    %6 = arith.mulf %5, %4 : vector<8x256xf32>
    %c1 = arith.constant 1 : index
    %c0_4 = arith.constant 0 : index
    %c0_5 = arith.constant 0 : index
    %7 = vector.load %arg1[%c1, %c0_4, %c0_5] : memref<36x8x256xf32, #tpu.memory_space<vmem>>, vector<1x8x256xf32>
    %8 = vector.shape_cast %7 : vector<1x8x256xf32> to vector<8x256xf32>
    %c16_i32 = arith.constant 16 : i32
    %9 = tpu.dynamic_rotate %0 by %c16_i32 dim 1 : vector<8x256xf32>, i32 -> vector<8x256xf32>
    %10 = arith.mulf %9, %8 : vector<8x256xf32>
    %c2 = arith.constant 2 : index
    %c0_6 = arith.constant 0 : index
    %c0_7 = arith.constant 0 : index
    %11 = vector.load %arg1[%c2, %c0_6, %c0_7] : memref<36x8x256xf32, #tpu.memory_space<vmem>>, vector<1x8x256xf32>
    %12 = vector.shape_cast %11 : vector<1x8x256xf32> to vector<8x256xf32>
    %c15_i32 = arith.constant 15 : i32
    %13 = tpu.dynamic_rotate %0 by %c15_i32 dim 1 : vector<8x256xf32>, i32 -> vector<8x256xf32>
    %14 = arith.mulf %13, %12 : vector<8x256xf32>
    %c3 = arith.constant 3 : index
    %c0_8 = arith.constant 0 : index
    %c0_9 = arith.constant 0 : index
    %15 = vector.load %arg1[%c3, %c0_8, %c0_9] : memref<36x8x256xf32, #tpu.memory_space<vmem>>, vector<1x8x256xf32>
    %16 = vector.shape_cast %15 : vector<1x8x256xf32> to vector<8x256xf32>
    %c1_i32 = arith.constant 1 : i32
    %17 = tpu.dynamic_rotate %0 by %c1_i32 dim 1 : vector<8x256xf32>, i32 -> vector<8x256xf32>
    %18 = arith.mulf %17, %16 : vector<8x256xf32>
    %c4 = arith.constant 4 : index
    %c0_10 = arith.constant 0 : index
    %c0_11 = arith.constant 0 : index
    %19 = vector.load %arg1[%c4, %c0_10, %c0_11] : memref<36x8x256xf32, #tpu.memory_space<vmem>>, vector<1x8x256xf32>
    %20 = vector.shape_cast %19 : vector<1x8x256xf32> to vector<8x256xf32>
    %21 = arith.mulf %0, %20 : vector<8x256xf32>
    %c5 = arith.constant 5 : index
    %c0_12 = arith.constant 0 : index
    %c0_13 = arith.constant 0 : index
    %22 = vector.load %arg1[%c5, %c0_12, %c0_13] : memref<36x8x256xf32, #tpu.memory_space<vmem>>, vector<1x8x256xf32>
    %23 = vector.shape_cast %22 : vector<1x8x256xf32> to vector<8x256xf32>
    %c255_i32 = arith.constant 255 : i32
    %24 = tpu.dynamic_rotate %0 by %c255_i32 dim 1 : vector<8x256xf32>, i32 -> vector<8x256xf32>
    %25 = arith.mulf %24, %23 : vector<8x256xf32>
    %c6 = arith.constant 6 : index
    %c0_14 = arith.constant 0 : index
    %c0_15 = arith.constant 0 : index
    %26 = vector.load %arg1[%c6, %c0_14, %c0_15] : memref<36x8x256xf32, #tpu.memory_space<vmem>>, vector<1x8x256xf32>
    %27 = vector.shape_cast %26 : vector<1x8x256xf32> to vector<8x256xf32>
    %c241_i32 = arith.constant 241 : i32
    %28 = tpu.dynamic_rotate %0 by %c241_i32 dim 1 : vector<8x256xf32>, i32 -> vector<8x256xf32>
    %29 = arith.mulf %28, %27 : vector<8x256xf32>
    %c7 = arith.constant 7 : index
    %c0_16 = arith.constant 0 : index
    %c0_17 = arith.constant 0 : index
    %30 = vector.load %arg1[%c7, %c0_16, %c0_17] : memref<36x8x256xf32, #tpu.memory_space<vmem>>, vector<1x8x256xf32>
    %31 = vector.shape_cast %30 : vector<1x8x256xf32> to vector<8x256xf32>
    %c240_i32 = arith.constant 240 : i32
    %32 = tpu.dynamic_rotate %0 by %c240_i32 dim 1 : vector<8x256xf32>, i32 -> vector<8x256xf32>
    %33 = arith.mulf %32, %31 : vector<8x256xf32>
    %c8 = arith.constant 8 : index
    %c0_18 = arith.constant 0 : index
    %c0_19 = arith.constant 0 : index
    %34 = vector.load %arg1[%c8, %c0_18, %c0_19] : memref<36x8x256xf32, #tpu.memory_space<vmem>>, vector<1x8x256xf32>
    %35 = vector.shape_cast %34 : vector<1x8x256xf32> to vector<8x256xf32>
    %c239_i32 = arith.constant 239 : i32
    %36 = tpu.dynamic_rotate %0 by %c239_i32 dim 1 : vector<8x256xf32>, i32 -> vector<8x256xf32>
    %37 = arith.mulf %36, %35 : vector<8x256xf32>
    %38 = arith.addf %6, %10 : vector<8x256xf32>
    %39 = arith.addf %14, %18 : vector<8x256xf32>
    %40 = arith.addf %21, %25 : vector<8x256xf32>
    %41 = arith.addf %29, %33 : vector<8x256xf32>
    %42 = arith.addf %38, %39 : vector<8x256xf32>
    %43 = arith.addf %40, %41 : vector<8x256xf32>
    %44 = arith.addf %42, %43 : vector<8x256xf32>
    %45 = arith.addf %44, %37 : vector<8x256xf32>
    %c0_20 = arith.constant 0 : index
    %c0_21 = arith.constant 0 : index
    %c0_22 = arith.constant 0 : index
    %46 = vector.load %arg2[%c0_20, %c0_21, %c0_22] : memref<4x8x1xf32, #tpu.memory_space<vmem>>, vector<1x8x1xf32>
    %47 = vector.shape_cast %46 : vector<1x8x1xf32> to vector<8x1xf32>
    %48 = vector.broadcast %47 : vector<8x1xf32> to vector<8x256xf32>
    %49 = arith.addf %45, %48 : vector<8x256xf32>
    %cst = arith.constant 0.000000e+00 : f32
    %50 = vector.broadcast %cst : f32 to vector<8x256xf32>
    %51 = arith.maximumf %49, %50 : vector<8x256xf32>
    %c9 = arith.constant 9 : index
    %c0_23 = arith.constant 0 : index
    %c0_24 = arith.constant 0 : index
    %52 = vector.load %arg1[%c9, %c0_23, %c0_24] : memref<36x8x256xf32, #tpu.memory_space<vmem>>, vector<1x8x256xf32>
    %53 = vector.shape_cast %52 : vector<1x8x256xf32> to vector<8x256xf32>
    %c51_i32 = arith.constant 51 : i32
    %54 = tpu.dynamic_rotate %2 by %c51_i32 dim 1 : vector<8x256xf32>, i32 -> vector<8x256xf32>
    %55 = arith.mulf %54, %53 : vector<8x256xf32>
    %c10 = arith.constant 10 : index
    %c0_25 = arith.constant 0 : index
    %c0_26 = arith.constant 0 : index
    %56 = vector.load %arg1[%c10, %c0_25, %c0_26] : memref<36x8x256xf32, #tpu.memory_space<vmem>>, vector<1x8x256xf32>
    %57 = vector.shape_cast %56 : vector<1x8x256xf32> to vector<8x256xf32>
    %c48_i32 = arith.constant 48 : i32
    %58 = tpu.dynamic_rotate %2 by %c48_i32 dim 1 : vector<8x256xf32>, i32 -> vector<8x256xf32>
    %59 = arith.mulf %58, %57 : vector<8x256xf32>
    %c11 = arith.constant 11 : index
    %c0_27 = arith.constant 0 : index
    %c0_28 = arith.constant 0 : index
    %60 = vector.load %arg1[%c11, %c0_27, %c0_28] : memref<36x8x256xf32, #tpu.memory_space<vmem>>, vector<1x8x256xf32>
    %61 = vector.shape_cast %60 : vector<1x8x256xf32> to vector<8x256xf32>
    %c45_i32 = arith.constant 45 : i32
    %62 = tpu.dynamic_rotate %2 by %c45_i32 dim 1 : vector<8x256xf32>, i32 -> vector<8x256xf32>
    %63 = arith.mulf %62, %61 : vector<8x256xf32>
    %c12 = arith.constant 12 : index
    %c0_29 = arith.constant 0 : index
    %c0_30 = arith.constant 0 : index
    %64 = vector.load %arg1[%c12, %c0_29, %c0_30] : memref<36x8x256xf32, #tpu.memory_space<vmem>>, vector<1x8x256xf32>
    %65 = vector.shape_cast %64 : vector<1x8x256xf32> to vector<8x256xf32>
    %c3_i32 = arith.constant 3 : i32
    %66 = tpu.dynamic_rotate %2 by %c3_i32 dim 1 : vector<8x256xf32>, i32 -> vector<8x256xf32>
    %67 = arith.mulf %66, %65 : vector<8x256xf32>
    %c13 = arith.constant 13 : index
    %c0_31 = arith.constant 0 : index
    %c0_32 = arith.constant 0 : index
    %68 = vector.load %arg1[%c13, %c0_31, %c0_32] : memref<36x8x256xf32, #tpu.memory_space<vmem>>, vector<1x8x256xf32>
    %69 = vector.shape_cast %68 : vector<1x8x256xf32> to vector<8x256xf32>
    %70 = arith.mulf %2, %69 : vector<8x256xf32>
    %c14 = arith.constant 14 : index
    %c0_33 = arith.constant 0 : index
    %c0_34 = arith.constant 0 : index
    %71 = vector.load %arg1[%c14, %c0_33, %c0_34] : memref<36x8x256xf32, #tpu.memory_space<vmem>>, vector<1x8x256xf32>
    %72 = vector.shape_cast %71 : vector<1x8x256xf32> to vector<8x256xf32>
    %c253_i32 = arith.constant 253 : i32
    %73 = tpu.dynamic_rotate %2 by %c253_i32 dim 1 : vector<8x256xf32>, i32 -> vector<8x256xf32>
    %74 = arith.mulf %73, %72 : vector<8x256xf32>
    %c15 = arith.constant 15 : index
    %c0_35 = arith.constant 0 : index
    %c0_36 = arith.constant 0 : index
    %75 = vector.load %arg1[%c15, %c0_35, %c0_36] : memref<36x8x256xf32, #tpu.memory_space<vmem>>, vector<1x8x256xf32>
    %76 = vector.shape_cast %75 : vector<1x8x256xf32> to vector<8x256xf32>
    %c211_i32 = arith.constant 211 : i32
    %77 = tpu.dynamic_rotate %2 by %c211_i32 dim 1 : vector<8x256xf32>, i32 -> vector<8x256xf32>
    %78 = arith.mulf %77, %76 : vector<8x256xf32>
    %c16 = arith.constant 16 : index
    %c0_37 = arith.constant 0 : index
    %c0_38 = arith.constant 0 : index
    %79 = vector.load %arg1[%c16, %c0_37, %c0_38] : memref<36x8x256xf32, #tpu.memory_space<vmem>>, vector<1x8x256xf32>
    %80 = vector.shape_cast %79 : vector<1x8x256xf32> to vector<8x256xf32>
    %c208_i32 = arith.constant 208 : i32
    %81 = tpu.dynamic_rotate %2 by %c208_i32 dim 1 : vector<8x256xf32>, i32 -> vector<8x256xf32>
    %82 = arith.mulf %81, %80 : vector<8x256xf32>
    %c17 = arith.constant 17 : index
    %c0_39 = arith.constant 0 : index
    %c0_40 = arith.constant 0 : index
    %83 = vector.load %arg1[%c17, %c0_39, %c0_40] : memref<36x8x256xf32, #tpu.memory_space<vmem>>, vector<1x8x256xf32>
    %84 = vector.shape_cast %83 : vector<1x8x256xf32> to vector<8x256xf32>
    %c205_i32 = arith.constant 205 : i32
    %85 = tpu.dynamic_rotate %2 by %c205_i32 dim 1 : vector<8x256xf32>, i32 -> vector<8x256xf32>
    %86 = arith.mulf %85, %84 : vector<8x256xf32>
    %87 = arith.addf %55, %59 : vector<8x256xf32>
    %88 = arith.addf %63, %67 : vector<8x256xf32>
    %89 = arith.addf %70, %74 : vector<8x256xf32>
    %90 = arith.addf %78, %82 : vector<8x256xf32>
    %91 = arith.addf %87, %88 : vector<8x256xf32>
    %92 = arith.addf %89, %90 : vector<8x256xf32>
    %93 = arith.addf %91, %92 : vector<8x256xf32>
    %94 = arith.addf %93, %86 : vector<8x256xf32>
    %c1_41 = arith.constant 1 : index
    %c0_42 = arith.constant 0 : index
    %c0_43 = arith.constant 0 : index
    %95 = vector.load %arg2[%c1_41, %c0_42, %c0_43] : memref<4x8x1xf32, #tpu.memory_space<vmem>>, vector<1x8x1xf32>
    %96 = vector.shape_cast %95 : vector<1x8x1xf32> to vector<8x1xf32>
    %97 = vector.broadcast %96 : vector<8x1xf32> to vector<8x256xf32>
    %98 = arith.addf %94, %97 : vector<8x256xf32>
    %cst_44 = arith.constant 0.000000e+00 : f32
    %99 = vector.broadcast %cst_44 : f32 to vector<8x256xf32>
    %100 = arith.maximumf %98, %99 : vector<8x256xf32>
    %101 = arith.addf %51, %100 : vector<8x256xf32>
    %c6_i32 = arith.constant 6 : i32
    %102 = tpu.dynamic_rotate %101 by %c6_i32 dim 0 : vector<8x256xf32>, i32 -> vector<8x256xf32>
    %c2_i32 = arith.constant 2 : i32
    %103 = tpu.dynamic_rotate %101 by %c2_i32 dim 0 : vector<8x256xf32>, i32 -> vector<8x256xf32>
    %c2_i32_45 = arith.constant 2 : i32
    %104 = vector.broadcast %c2_i32_45 : i32 to vector<8x256xi32>
    %105 = arith.andi %1, %104 : vector<8x256xi32>
    %c0_i32 = arith.constant 0 : i32
    %106 = vector.broadcast %c0_i32 : i32 to vector<8x256xi32>
    %107 = arith.cmpi eq, %105, %106 : vector<8x256xi32>
    %108 = arith.select %107, %102, %103 : vector<8x256xi1>, vector<8x256xf32>
    %c18 = arith.constant 18 : index
    %c0_46 = arith.constant 0 : index
    %c0_47 = arith.constant 0 : index
    %109 = vector.load %arg1[%c18, %c0_46, %c0_47] : memref<36x8x256xf32, #tpu.memory_space<vmem>>, vector<1x8x256xf32>
    %110 = vector.shape_cast %109 : vector<1x8x256xf32> to vector<8x256xf32>
    %c17_i32_48 = arith.constant 17 : i32
    %111 = tpu.dynamic_rotate %101 by %c17_i32_48 dim 1 : vector<8x256xf32>, i32 -> vector<8x256xf32>
    %112 = arith.mulf %111, %110 : vector<8x256xf32>
    %c19 = arith.constant 19 : index
    %c0_49 = arith.constant 0 : index
    %c0_50 = arith.constant 0 : index
    %113 = vector.load %arg1[%c19, %c0_49, %c0_50] : memref<36x8x256xf32, #tpu.memory_space<vmem>>, vector<1x8x256xf32>
    %114 = vector.shape_cast %113 : vector<1x8x256xf32> to vector<8x256xf32>
    %c16_i32_51 = arith.constant 16 : i32
    %115 = tpu.dynamic_rotate %101 by %c16_i32_51 dim 1 : vector<8x256xf32>, i32 -> vector<8x256xf32>
    %116 = arith.mulf %115, %114 : vector<8x256xf32>
    %c20 = arith.constant 20 : index
    %c0_52 = arith.constant 0 : index
    %c0_53 = arith.constant 0 : index
    %117 = vector.load %arg1[%c20, %c0_52, %c0_53] : memref<36x8x256xf32, #tpu.memory_space<vmem>>, vector<1x8x256xf32>
    %118 = vector.shape_cast %117 : vector<1x8x256xf32> to vector<8x256xf32>
    %c15_i32_54 = arith.constant 15 : i32
    %119 = tpu.dynamic_rotate %101 by %c15_i32_54 dim 1 : vector<8x256xf32>, i32 -> vector<8x256xf32>
    %120 = arith.mulf %119, %118 : vector<8x256xf32>
    %c21 = arith.constant 21 : index
    %c0_55 = arith.constant 0 : index
    %c0_56 = arith.constant 0 : index
    %121 = vector.load %arg1[%c21, %c0_55, %c0_56] : memref<36x8x256xf32, #tpu.memory_space<vmem>>, vector<1x8x256xf32>
    %122 = vector.shape_cast %121 : vector<1x8x256xf32> to vector<8x256xf32>
    %c1_i32_57 = arith.constant 1 : i32
    %123 = tpu.dynamic_rotate %101 by %c1_i32_57 dim 1 : vector<8x256xf32>, i32 -> vector<8x256xf32>
    %124 = arith.mulf %123, %122 : vector<8x256xf32>
    %c22 = arith.constant 22 : index
    %c0_58 = arith.constant 0 : index
    %c0_59 = arith.constant 0 : index
    %125 = vector.load %arg1[%c22, %c0_58, %c0_59] : memref<36x8x256xf32, #tpu.memory_space<vmem>>, vector<1x8x256xf32>
    %126 = vector.shape_cast %125 : vector<1x8x256xf32> to vector<8x256xf32>
    %127 = arith.mulf %101, %126 : vector<8x256xf32>
    %c23 = arith.constant 23 : index
    %c0_60 = arith.constant 0 : index
    %c0_61 = arith.constant 0 : index
    %128 = vector.load %arg1[%c23, %c0_60, %c0_61] : memref<36x8x256xf32, #tpu.memory_space<vmem>>, vector<1x8x256xf32>
    %129 = vector.shape_cast %128 : vector<1x8x256xf32> to vector<8x256xf32>
    %c255_i32_62 = arith.constant 255 : i32
    %130 = tpu.dynamic_rotate %101 by %c255_i32_62 dim 1 : vector<8x256xf32>, i32 -> vector<8x256xf32>
    %131 = arith.mulf %130, %129 : vector<8x256xf32>
    %c24 = arith.constant 24 : index
    %c0_63 = arith.constant 0 : index
    %c0_64 = arith.constant 0 : index
    %132 = vector.load %arg1[%c24, %c0_63, %c0_64] : memref<36x8x256xf32, #tpu.memory_space<vmem>>, vector<1x8x256xf32>
    %133 = vector.shape_cast %132 : vector<1x8x256xf32> to vector<8x256xf32>
    %c241_i32_65 = arith.constant 241 : i32
    %134 = tpu.dynamic_rotate %101 by %c241_i32_65 dim 1 : vector<8x256xf32>, i32 -> vector<8x256xf32>
    %135 = arith.mulf %134, %133 : vector<8x256xf32>
    %c25 = arith.constant 25 : index
    %c0_66 = arith.constant 0 : index
    %c0_67 = arith.constant 0 : index
    %136 = vector.load %arg1[%c25, %c0_66, %c0_67] : memref<36x8x256xf32, #tpu.memory_space<vmem>>, vector<1x8x256xf32>
    %137 = vector.shape_cast %136 : vector<1x8x256xf32> to vector<8x256xf32>
    %c240_i32_68 = arith.constant 240 : i32
    %138 = tpu.dynamic_rotate %101 by %c240_i32_68 dim 1 : vector<8x256xf32>, i32 -> vector<8x256xf32>
    %139 = arith.mulf %138, %137 : vector<8x256xf32>
    %c26 = arith.constant 26 : index
    %c0_69 = arith.constant 0 : index
    %c0_70 = arith.constant 0 : index
    %140 = vector.load %arg1[%c26, %c0_69, %c0_70] : memref<36x8x256xf32, #tpu.memory_space<vmem>>, vector<1x8x256xf32>
    %141 = vector.shape_cast %140 : vector<1x8x256xf32> to vector<8x256xf32>
    %c239_i32_71 = arith.constant 239 : i32
    %142 = tpu.dynamic_rotate %101 by %c239_i32_71 dim 1 : vector<8x256xf32>, i32 -> vector<8x256xf32>
    %143 = arith.mulf %142, %141 : vector<8x256xf32>
    %144 = arith.addf %112, %116 : vector<8x256xf32>
    %145 = arith.addf %120, %124 : vector<8x256xf32>
    %146 = arith.addf %127, %131 : vector<8x256xf32>
    %147 = arith.addf %135, %139 : vector<8x256xf32>
    %148 = arith.addf %144, %145 : vector<8x256xf32>
    %149 = arith.addf %146, %147 : vector<8x256xf32>
    %150 = arith.addf %148, %149 : vector<8x256xf32>
    %151 = arith.addf %150, %143 : vector<8x256xf32>
    %c2_72 = arith.constant 2 : index
    %c0_73 = arith.constant 0 : index
    %c0_74 = arith.constant 0 : index
    %152 = vector.load %arg2[%c2_72, %c0_73, %c0_74] : memref<4x8x1xf32, #tpu.memory_space<vmem>>, vector<1x8x1xf32>
    %153 = vector.shape_cast %152 : vector<1x8x1xf32> to vector<8x1xf32>
    %154 = vector.broadcast %153 : vector<8x1xf32> to vector<8x256xf32>
    %155 = arith.addf %151, %154 : vector<8x256xf32>
    %cst_75 = arith.constant 0.000000e+00 : f32
    %156 = vector.broadcast %cst_75 : f32 to vector<8x256xf32>
    %157 = arith.maximumf %155, %156 : vector<8x256xf32>
    %c27 = arith.constant 27 : index
    %c0_76 = arith.constant 0 : index
    %c0_77 = arith.constant 0 : index
    %158 = vector.load %arg1[%c27, %c0_76, %c0_77] : memref<36x8x256xf32, #tpu.memory_space<vmem>>, vector<1x8x256xf32>
    %159 = vector.shape_cast %158 : vector<1x8x256xf32> to vector<8x256xf32>
    %c51_i32_78 = arith.constant 51 : i32
    %160 = tpu.dynamic_rotate %108 by %c51_i32_78 dim 1 : vector<8x256xf32>, i32 -> vector<8x256xf32>
    %161 = arith.mulf %160, %159 : vector<8x256xf32>
    %c28 = arith.constant 28 : index
    %c0_79 = arith.constant 0 : index
    %c0_80 = arith.constant 0 : index
    %162 = vector.load %arg1[%c28, %c0_79, %c0_80] : memref<36x8x256xf32, #tpu.memory_space<vmem>>, vector<1x8x256xf32>
    %163 = vector.shape_cast %162 : vector<1x8x256xf32> to vector<8x256xf32>
    %c48_i32_81 = arith.constant 48 : i32
    %164 = tpu.dynamic_rotate %108 by %c48_i32_81 dim 1 : vector<8x256xf32>, i32 -> vector<8x256xf32>
    %165 = arith.mulf %164, %163 : vector<8x256xf32>
    %c29 = arith.constant 29 : index
    %c0_82 = arith.constant 0 : index
    %c0_83 = arith.constant 0 : index
    %166 = vector.load %arg1[%c29, %c0_82, %c0_83] : memref<36x8x256xf32, #tpu.memory_space<vmem>>, vector<1x8x256xf32>
    %167 = vector.shape_cast %166 : vector<1x8x256xf32> to vector<8x256xf32>
    %c45_i32_84 = arith.constant 45 : i32
    %168 = tpu.dynamic_rotate %108 by %c45_i32_84 dim 1 : vector<8x256xf32>, i32 -> vector<8x256xf32>
    %169 = arith.mulf %168, %167 : vector<8x256xf32>
    %c30 = arith.constant 30 : index
    %c0_85 = arith.constant 0 : index
    %c0_86 = arith.constant 0 : index
    %170 = vector.load %arg1[%c30, %c0_85, %c0_86] : memref<36x8x256xf32, #tpu.memory_space<vmem>>, vector<1x8x256xf32>
    %171 = vector.shape_cast %170 : vector<1x8x256xf32> to vector<8x256xf32>
    %c3_i32_87 = arith.constant 3 : i32
    %172 = tpu.dynamic_rotate %108 by %c3_i32_87 dim 1 : vector<8x256xf32>, i32 -> vector<8x256xf32>
    %173 = arith.mulf %172, %171 : vector<8x256xf32>
    %c31 = arith.constant 31 : index
    %c0_88 = arith.constant 0 : index
    %c0_89 = arith.constant 0 : index
    %174 = vector.load %arg1[%c31, %c0_88, %c0_89] : memref<36x8x256xf32, #tpu.memory_space<vmem>>, vector<1x8x256xf32>
    %175 = vector.shape_cast %174 : vector<1x8x256xf32> to vector<8x256xf32>
    %176 = arith.mulf %108, %175 : vector<8x256xf32>
    %c32 = arith.constant 32 : index
    %c0_90 = arith.constant 0 : index
    %c0_91 = arith.constant 0 : index
    %177 = vector.load %arg1[%c32, %c0_90, %c0_91] : memref<36x8x256xf32, #tpu.memory_space<vmem>>, vector<1x8x256xf32>
    %178 = vector.shape_cast %177 : vector<1x8x256xf32> to vector<8x256xf32>
    %c253_i32_92 = arith.constant 253 : i32
    %179 = tpu.dynamic_rotate %108 by %c253_i32_92 dim 1 : vector<8x256xf32>, i32 -> vector<8x256xf32>
    %180 = arith.mulf %179, %178 : vector<8x256xf32>
    %c33 = arith.constant 33 : index
    %c0_93 = arith.constant 0 : index
    %c0_94 = arith.constant 0 : index
    %181 = vector.load %arg1[%c33, %c0_93, %c0_94] : memref<36x8x256xf32, #tpu.memory_space<vmem>>, vector<1x8x256xf32>
    %182 = vector.shape_cast %181 : vector<1x8x256xf32> to vector<8x256xf32>
    %c211_i32_95 = arith.constant 211 : i32
    %183 = tpu.dynamic_rotate %108 by %c211_i32_95 dim 1 : vector<8x256xf32>, i32 -> vector<8x256xf32>
    %184 = arith.mulf %183, %182 : vector<8x256xf32>
    %c34 = arith.constant 34 : index
    %c0_96 = arith.constant 0 : index
    %c0_97 = arith.constant 0 : index
    %185 = vector.load %arg1[%c34, %c0_96, %c0_97] : memref<36x8x256xf32, #tpu.memory_space<vmem>>, vector<1x8x256xf32>
    %186 = vector.shape_cast %185 : vector<1x8x256xf32> to vector<8x256xf32>
    %c208_i32_98 = arith.constant 208 : i32
    %187 = tpu.dynamic_rotate %108 by %c208_i32_98 dim 1 : vector<8x256xf32>, i32 -> vector<8x256xf32>
    %188 = arith.mulf %187, %186 : vector<8x256xf32>
    %c35 = arith.constant 35 : index
    %c0_99 = arith.constant 0 : index
    %c0_100 = arith.constant 0 : index
    %189 = vector.load %arg1[%c35, %c0_99, %c0_100] : memref<36x8x256xf32, #tpu.memory_space<vmem>>, vector<1x8x256xf32>
    %190 = vector.shape_cast %189 : vector<1x8x256xf32> to vector<8x256xf32>
    %c205_i32_101 = arith.constant 205 : i32
    %191 = tpu.dynamic_rotate %108 by %c205_i32_101 dim 1 : vector<8x256xf32>, i32 -> vector<8x256xf32>
    %192 = arith.mulf %191, %190 : vector<8x256xf32>
    %193 = arith.addf %161, %165 : vector<8x256xf32>
    %194 = arith.addf %169, %173 : vector<8x256xf32>
    %195 = arith.addf %176, %180 : vector<8x256xf32>
    %196 = arith.addf %184, %188 : vector<8x256xf32>
    %197 = arith.addf %193, %194 : vector<8x256xf32>
    %198 = arith.addf %195, %196 : vector<8x256xf32>
    %199 = arith.addf %197, %198 : vector<8x256xf32>
    %200 = arith.addf %199, %192 : vector<8x256xf32>
    %c3_102 = arith.constant 3 : index
    %c0_103 = arith.constant 0 : index
    %c0_104 = arith.constant 0 : index
    %201 = vector.load %arg2[%c3_102, %c0_103, %c0_104] : memref<4x8x1xf32, #tpu.memory_space<vmem>>, vector<1x8x1xf32>
    %202 = vector.shape_cast %201 : vector<1x8x1xf32> to vector<8x1xf32>
    %203 = vector.broadcast %202 : vector<8x1xf32> to vector<8x256xf32>
    %204 = arith.addf %200, %203 : vector<8x256xf32>
    %cst_105 = arith.constant 0.000000e+00 : f32
    %205 = vector.broadcast %cst_105 : f32 to vector<8x256xf32>
    %206 = arith.maximumf %204, %205 : vector<8x256xf32>
    %207 = arith.addf %157, %206 : vector<8x256xf32>
    %208 = arith.addf %207, %0 : vector<8x256xf32>
    %c0_106 = arith.constant 0 : index
    %c0_107 = arith.constant 0 : index
    %209 = vector.load %arg3[%c0_106, %c0_107] : memref<8x256xf32, #tpu.memory_space<vmem>>, vector<8x256xf32>
    tpu.vector_store %arg3[%c0_106, %c0_107], %208 {strides = array<i32>} : memref<8x256xf32, #tpu.memory_space<vmem>>, vector<8x256xf32>,
    return
  }
}

</mosaic_0001>

<llo_original>
// kernel: butterfly_conv_v2.1
$region0: #{butterfly_conv_v2.1}
  #allocation0 [shape = 'u32[]', space=smem, size = 0x4, offset = 0x4, fixed_abs, tag = 'smem constant byte address 0x4 - core index']
  #allocation1 [shape = 'u32[144,128]{1,0:T(1,128)}', space=vmem, size = 0x12000, scoped, tag = 'internal scratch']
  %s0 = inlined_call_operand.vmem [shape: f32[8,256], index: 0, kind: input, shape index: {}]
  %s1 = inlined_call_operand.vmem [shape: f32[36,8,256], index: 1, kind: input, shape index: {}]
  %s2 = inlined_call_operand.vmem [shape: f32[4,8,1], index: 2, kind: input, shape index: {}]
  %s3 = inlined_call_operand.vmem [shape: f32[8,256], index: 3, kind: output, shape index: {}]
  %s4 = sld [smem:[#allocation0]]
  $region22: #{butterfly_conv_v2.1} parent=0
    _
  %s6 = ssub.s32 1, %s4
  %s7 = scalar_select 0, %s6, %s4
  // Predicated region
  $region2: #{butterfly_conv_v2.1} parent=0 // pred_check
    _
  $region3: #{butterfly_conv_v2.1} parent=0 // pred_check_branch
    %9 = sbr.rel (0) target = $region5
  $region4: #{butterfly_conv_v2.1} parent=0 // pred_region
    _
  $region5: #{butterfly_conv_v2.1} parent=0 // pred_fallthru
    _
  // Predicated region
  $region6: #{butterfly_conv_v2.1} parent=0 // pred_check
    _
  $region7: #{butterfly_conv_v2.1} parent=0 // pred_check_branch
    %11 = sbr.rel (0) target = $region9
  $region8: #{butterfly_conv_v2.1} parent=0 // pred_region
    _
  $region9: #{butterfly_conv_v2.1} parent=0 // pred_fallthru
    _
  // Predicated region
  $region10: #{butterfly_conv_v2.1} parent=0 // pred_check
    _
  $region11: #{butterfly_conv_v2.1} parent=0 // pred_check_branch
    %13 = sbr.rel (0) target = $region13
  $region12: #{butterfly_conv_v2.1} parent=0 // pred_region
    _
  $region13: #{butterfly_conv_v2.1} parent=0 // pred_fallthru
    _
  %v14 = vld [vmem:[%s0] sm:$0xff]
  %v15 = vld [vmem:[%s0 + $0x8] sm:$0xff]
  %v16 = vlaneseq
  %v17 = vshrl.u32 %v16, 7
  %v18 = vrot.slane %v14, 4
  %v19 = vrot.slane %v15, 4
  %v20 = vld [vmem:[%s1] sm:$0xff]
  %v21 = vld [vmem:[%s1 + $0x8] sm:$0xff]
  %22 = vrot.lane.b32.xlu0 %v14, 17
  %v23 = vpop.permute.xlu0 %22
  %24 = vrot.lane.b32.xlu0 %v15, 17
  %v25 = vpop.permute.xlu0 %24
  %v26 = vlaneseq
  %v27 = vand.u32 %v26, 127
  %vm28 = vcmp.lt.s32.totalorder %v27, 17
  %v29 = vsel %vm28, %v23, %v25
  %v30 = vsel %vm28, %v25, %v23
  %v31 = vmul.f32 %v30, %v20
  %v32 = vmul.f32 %v29, %v21
  %s33 = scalar_lea.vmem %s1, 16
  %v34 = vld [vmem:[%s33] sm:$0xff]
  %v35 = vld [vmem:[%s33 + $0x8] sm:$0xff]
  %36 = vrot.lane.b32.xlu0 %v14, 16
  %v37 = vpop.permute.xlu0 %36
  %38 = vrot.lane.b32.xlu0 %v15, 16
  %v39 = vpop.permute.xlu0 %38
  %vm40 = vcmp.lt.s32.totalorder %v27, 16
  %v41 = vsel %vm40, %v37, %v39
  %v42 = vsel %vm40, %v39, %v37
  %v43 = vmul.f32 %v42, %v34
  %v44 = vmul.f32 %v41, %v35
  %s45 = scalar_lea.vmem %s1, 32
  %v46 = vld [vmem:[%s45] sm:$0xff]
  %v47 = vld [vmem:[%s45 + $0x8] sm:$0xff]
  %48 = vrot.lane.b32.xlu0 %v14, 15
  %v49 = vpop.permute.xlu0 %48
  %50 = vrot.lane.b32.xlu0 %v15, 15
  %v51 = vpop.permute.xlu0 %50
  %vm52 = vcmp.lt.s32.totalorder %v27, 15
  %v53 = vsel %vm52, %v49, %v51
  %v54 = vsel %vm52, %v51, %v49
  %v55 = vmul.f32 %v54, %v46
  %v56 = vmul.f32 %v53, %v47
  %s57 = scalar_lea.vmem %s1, 48
  %v58 = vld [vmem:[%s57] sm:$0xff]
  %v59 = vld [vmem:[%s57 + $0x8] sm:$0xff]
  %60 = vrot.lane.b32.xlu0 %v14, 1
  %v61 = vpop.permute.xlu0 %60
  %62 = vrot.lane.b32.xlu0 %v15, 1
  %v63 = vpop.permute.xlu0 %62
  %vm64 = vcmp.lt.s32.totalorder %v27, 1
  %v65 = vsel %vm64, %v61, %v63
  %v66 = vsel %vm64, %v63, %v61
  %v67 = vmul.f32 %v66, %v58
  %v68 = vmul.f32 %v65, %v59
  %s69 = scalar_lea.vmem %s1, 64
  %v70 = vld [vmem:[%s69] sm:$0xff]
  %v71 = vld [vmem:[%s69 + $0x8] sm:$0xff]
  %v72 = vmul.f32 %v14, %v70
  %v73 = vmul.f32 %v15, %v71
  %s74 = scalar_lea.vmem %s1, 80
  %v75 = vld [vmem:[%s74] sm:$0xff]
  %v76 = vld [vmem:[%s74 + $0x8] sm:$0xff]
  %77 = vrot.lane.b32.xlu0 %v14, 127
  %v78 = vpop.permute.xlu0 %77
  %79 = vrot.lane.b32.xlu0 %v15, 127
  %v80 = vpop.permute.xlu0 %79
  %vm81 = vcmp.lt.s32.totalorder %v27, 127
  %v82 = vsel %vm81, %v78, %v80
  %v83 = vsel %vm81, %v80, %v78
  %v84 = vmul.f32 %v82, %v75
  %v85 = vmul.f32 %v83, %v76
  %s86 = scalar_lea.vmem %s1, 96
  %v87 = vld [vmem:[%s86] sm:$0xff]
  %v88 = vld [vmem:[%s86 + $0x8] sm:$0xff]
  %89 = vrot.lane.b32.xlu0 %v14, 113
  %v90 = vpop.permute.xlu0 %89
  %91 = vrot.lane.b32.xlu0 %v15, 113
  %v92 = vpop.permute.xlu0 %91
  %vm93 = vcmp.lt.s32.totalorder %v27, 113
  %v94 = vsel %vm93, %v90, %v92
  %v95 = vsel %vm93, %v92, %v90
  %v96 = vmul.f32 %v94, %v87
  %v97 = vmul.f32 %v95, %v88
  %s98 = scalar_lea.vmem %s1, 112
  %v99 = vld [vmem:[%s98] sm:$0xff]
  %v100 = vld [vmem:[%s98 + $0x8] sm:$0xff]
  %101 = vrot.lane.b32.xlu0 %v14, 112
  %v102 = vpop.permute.xlu0 %101
  %103 = vrot.lane.b32.xlu0 %v15, 112
  %v104 = vpop.permute.xlu0 %103
  %vm105 = vcmp.lt.s32.totalorder %v27, 112
  %v106 = vsel %vm105, %v102, %v104
  %v107 = vsel %vm105, %v104, %v102
  %v108 = vmul.f32 %v106, %v99
  %v109 = vmul.f32 %v107, %v100
  %s110 = scalar_lea.vmem %s1, 128
  %v111 = vld [vmem:[%s110] sm:$0xff]
  %v112 = vld [vmem:[%s110 + $0x8] sm:$0xff]
  %113 = vrot.lane.b32.xlu0 %v14, 111
  %v114 = vpop.permute.xlu0 %113
  %115 = vrot.lane.b32.xlu0 %v15, 111
  %v116 = vpop.permute.xlu0 %115
  %vm117 = vcmp.lt.s32.totalorder %v27, 111
  %v118 = vsel %vm117, %v114, %v116
  %v119 = vsel %vm117, %v116, %v114
  %v120 = vmul.f32 %v118, %v111
  %v121 = vmul.f32 %v119, %v112
  %v122 = vadd.f32 %v31, %v43
  %v123 = vadd.f32 %v32, %v44
  %v124 = vadd.f32 %v55, %v67
  %v125 = vadd.f32 %v56, %v68
  %v126 = vadd.f32 %v72, %v84
  %v127 = vadd.f32 %v73, %v85
  %v128 = vadd.f32 %v96, %v108
  %v129 = vadd.f32 %v97, %v109
  %v130 = vadd.f32 %v122, %v124
  %v131 = vadd.f32 %v123, %v125
  %v132 = vadd.f32 %v126, %v128
  %v133 = vadd.f32 %v127, %v129
  %v134 = vadd.f32 %v130, %v132
  %v135 = vadd.f32 %v131, %v133
  %v136 = vadd.f32 %v134, %v120
  %v137 = vadd.f32 %v135, %v121
  %v138 = vld [vmem:[%s2] sm:$0xff]
  %140 = vset.pattern.permute.xlu0 0
  %141 = vperm.xlu0 %140, %v138
  %v142 = vpop.permute.xlu0 %141
  %v144 = vadd.f32 %v136, %v142
  %v145 = vadd.f32 %v137, %v142
  %v146 = vmax.f32 %v144, 0.0
  %v147 = vmax.f32 %v145, 0.0
  %s148 = scalar_lea.vmem %s1, 144
  %v149 = vld [vmem:[%s148] sm:$0xff]
  %v150 = vld [vmem:[%s148 + $0x8] sm:$0xff]
  %151 = vrot.lane.b32.xlu0 %v18, 51
  %v152 = vpop.permute.xlu0 %151
  %153 = vrot.lane.b32.xlu0 %v19, 51
  %v154 = vpop.permute.xlu0 %153
  %vm155 = vcmp.lt.s32.totalorder %v27, 51
  %v156 = vsel %vm155, %v152, %v154
  %v157 = vsel %vm155, %v154, %v152
  %v158 = vmul.f32 %v157, %v149
  %v159 = vmul.f32 %v156, %v150
  %s160 = scalar_lea.vmem %s1, 160
  %v161 = vld [vmem:[%s160] sm:$0xff]
  %v162 = vld [vmem:[%s160 + $0x8] sm:$0xff]
  %163 = vrot.lane.b32.xlu0 %v18, 48
  %v164 = vpop.permute.xlu0 %163
  %165 = vrot.lane.b32.xlu0 %v19, 48
  %v166 = vpop.permute.xlu0 %165
  %vm167 = vcmp.lt.s32.totalorder %v27, 48
  %v168 = vsel %vm167, %v164, %v166
  %v169 = vsel %vm167, %v166, %v164
  %v170 = vmul.f32 %v169, %v161
  %v171 = vmul.f32 %v168, %v162
  %s172 = scalar_lea.vmem %s1, 176
  %v173 = vld [vmem:[%s172] sm:$0xff]
  %v174 = vld [vmem:[%s172 + $0x8] sm:$0xff]
  %175 = vrot.lane.b32.xlu0 %v18, 45
  %v176 = vpop.permute.xlu0 %175
  %177 = vrot.lane.b32.xlu0 %v19, 45
  %v178 = vpop.permute.xlu0 %177
  %vm179 = vcmp.lt.s32.totalorder %v27, 45
  %v180 = vsel %vm179, %v176, %v178
  %v181 = vsel %vm179, %v178, %v176
  %v182 = vmul.f32 %v181, %v173
  %v183 = vmul.f32 %v180, %v174
  %s184 = scalar_lea.vmem %s1, 192
  %v185 = vld [vmem:[%s184] sm:$0xff]
  %v186 = vld [vmem:[%s184 + $0x8] sm:$0xff]
  %187 = vrot.lane.b32.xlu0 %v18, 3
  %v188 = vpop.permute.xlu0 %187
  %189 = vrot.lane.b32.xlu0 %v19, 3
  %v190 = vpop.permute.xlu0 %189
  %vm191 = vcmp.lt.s32.totalorder %v27, 3
  %v192 = vsel %vm191, %v188, %v190
  %v193 = vsel %vm191, %v190, %v188
  %v194 = vmul.f32 %v193, %v185
  %v195 = vmul.f32 %v192, %v186
  %s196 = scalar_lea.vmem %s1, 208
  %v197 = vld [vmem:[%s196] sm:$0xff]
  %v198 = vld [vmem:[%s196 + $0x8] sm:$0xff]
  %v199 = vmul.f32 %v18, %v197
  %v200 = vmul.f32 %v19, %v198
  %s201 = scalar_lea.vmem %s1, 224
  %v202 = vld [vmem:[%s201] sm:$0xff]
  %v203 = vld [vmem:[%s201 + $0x8] sm:$0xff]
  %204 = vrot.lane.b32.xlu0 %v18, 125
  %v205 = vpop.permute.xlu0 %204
  %206 = vrot.lane.b32.xlu0 %v19, 125
  %v207 = vpop.permute.xlu0 %206
  %vm208 = vcmp.lt.s32.totalorder %v27, 125
  %v209 = vsel %vm208, %v205, %v207
  %v210 = vsel %vm208, %v207, %v205
  %v211 = vmul.f32 %v209, %v202
  %v212 = vmul.f32 %v210, %v203
  %s213 = scalar_lea.vmem %s1, 240
  %v214 = vld [vmem:[%s213] sm:$0xff]
  %v215 = vld [vmem:[%s213 + $0x8] sm:$0xff]
  %216 = vrot.lane.b32.xlu0 %v18, 83
  %v217 = vpop.permute.xlu0 %216
  %218 = vrot.lane.b32.xlu0 %v19, 83
  %v219 = vpop.permute.xlu0 %218
  %vm220 = vcmp.lt.s32.totalorder %v27, 83
  %v221 = vsel %vm220, %v217, %v219
  %v222 = vsel %vm220, %v219, %v217
  %v223 = vmul.f32 %v221, %v214
  %v224 = vmul.f32 %v222, %v215
  %s225 = scalar_lea.vmem %s1, 256
  %v226 = vld [vmem:[%s225] sm:$0xff]
  %v227 = vld [vmem:[%s225 + $0x8] sm:$0xff]
  %228 = vrot.lane.b32.xlu0 %v18, 80
  %v229 = vpop.permute.xlu0 %228
  %230 = vrot.lane.b32.xlu0 %v19, 80
  %v231 = vpop.permute.xlu0 %230
  %vm232 = vcmp.lt.s32.totalorder %v27, 80
  %v233 = vsel %vm232, %v229, %v231
  %v234 = vsel %vm232, %v231, %v229
  %v235 = vmul.f32 %v233, %v226
  %v236 = vmul.f32 %v234, %v227
  %s237 = scalar_lea.vmem %s1, 272
  %v238 = vld [vmem:[%s237] sm:$0xff]
  %v239 = vld [vmem:[%s237 + $0x8] sm:$0xff]
  %240 = vrot.lane.b32.xlu0 %v18, 77
  %v241 = vpop.permute.xlu0 %240
  %242 = vrot.lane.b32.xlu0 %v19, 77
  %v243 = vpop.permute.xlu0 %242
  %vm244 = vcmp.lt.s32.totalorder %v27, 77
  %v245 = vsel %vm244, %v241, %v243
  %v246 = vsel %vm244, %v243, %v241
  %v247 = vmul.f32 %v245, %v238
  %v248 = vmul.f32 %v246, %v239
  %v249 = vadd.f32 %v158, %v170
  %v250 = vadd.f32 %v159, %v171
  %v251 = vadd.f32 %v182, %v194
  %v252 = vadd.f32 %v183, %v195
  %v253 = vadd.f32 %v199, %v211
  %v254 = vadd.f32 %v200, %v212
  %v255 = vadd.f32 %v223, %v235
  %v256 = vadd.f32 %v224, %v236
  %v257 = vadd.f32 %v249, %v251
  %v258 = vadd.f32 %v250, %v252
  %v259 = vadd.f32 %v253, %v255
  %v260 = vadd.f32 %v254, %v256
  %v261 = vadd.f32 %v257, %v259
  %v262 = vadd.f32 %v258, %v260
  %v263 = vadd.f32 %v261, %v247
  %v264 = vadd.f32 %v262, %v248
  %s265 = scalar_lea.vmem %s2, 8
  %v266 = vld [vmem:[%s265] sm:$0xff]
  %268 = vset.pattern.permute.xlu0 0
  %269 = vperm.xlu0 %268, %v266
  %v270 = vpop.permute.xlu0 %269
  %v272 = vadd.f32 %v263, %v270
  %v273 = vadd.f32 %v264, %v270
  %v274 = vmax.f32 %v272, 0.0
  %v275 = vmax.f32 %v273, 0.0
  %v276 = vadd.f32 %v146, %v274
  %v277 = vadd.f32 %v147, %v275
  %v278 = vrot.slane %v276, 2
  %v279 = vrot.slane %v277, 2
  %v280 = vrot.slane %v276, 6
  %v281 = vrot.slane %v277, 6
  %v282 = vand.u32 %v17, 2
  %vm283 = vcmp.eq.s32.totalorder %v282, 0
  %v284 = vsel %vm283, %v278, %v280
  %v285 = vsel %vm283, %v279, %v281
  %s286 = scalar_lea.vmem %s1, 288
  %v287 = vld [vmem:[%s286] sm:$0xff]
  %v288 = vld [vmem:[%s286 + $0x8] sm:$0xff]
  %289 = vrot.lane.b32.xlu0 %v276, 17
  %v290 = vpop.permute.xlu0 %289
  %291 = vrot.lane.b32.xlu0 %v277, 17
  %v292 = vpop.permute.xlu0 %291
  %v293 = vsel %vm28, %v290, %v292
  %v294 = vsel %vm28, %v292, %v290
  %v295 = vmul.f32 %v294, %v287
  %v296 = vmul.f32 %v293, %v288
  %s297 = scalar_lea.vmem %s1, 304
  %v298 = vld [vmem:[%s297] sm:$0xff]
  %v299 = vld [vmem:[%s297 + $0x8] sm:$0xff]
  %300 = vrot.lane.b32.xlu0 %v276, 16
  %v301 = vpop.permute.xlu0 %300
  %302 = vrot.lane.b32.xlu0 %v277, 16
  %v303 = vpop.permute.xlu0 %302
  %v304 = vsel %vm40, %v301, %v303
  %v305 = vsel %vm40, %v303, %v301
  %v306 = vmul.f32 %v305, %v298
  %v307 = vmul.f32 %v304, %v299
  %s308 = scalar_lea.vmem %s1, 320
  %v309 = vld [vmem:[%s308] sm:$0xff]
  %v310 = vld [vmem:[%s308 + $0x8] sm:$0xff]
  %311 = vrot.lane.b32.xlu0 %v276, 15
  %v312 = vpop.permute.xlu0 %311
  %313 = vrot.lane.b32.xlu0 %v277, 15
  %v314 = vpop.permute.xlu0 %313
  %v315 = vsel %vm52, %v312, %v314
  %v316 = vsel %vm52, %v314, %v312
  %v317 = vmul.f32 %v316, %v309
  %v318 = vmul.f32 %v315, %v310
  %s319 = scalar_lea.vmem %s1, 336
  %v320 = vld [vmem:[%s319] sm:$0xff]
  %v321 = vld [vmem:[%s319 + $0x8] sm:$0xff]
  %322 = vrot.lane.b32.xlu0 %v276, 1
  %v323 = vpop.permute.xlu0 %322
  %324 = vrot.lane.b32.xlu0 %v277, 1
  %v325 = vpop.permute.xlu0 %324
  %v326 = vsel %vm64, %v323, %v325
  %v327 = vsel %vm64, %v325, %v323
  %v328 = vmul.f32 %v327, %v320
  %v329 = vmul.f32 %v326, %v321
  %s330 = scalar_lea.vmem %s1, 352
  %v331 = vld [vmem:[%s330] sm:$0xff]
  %v332 = vld [vmem:[%s330 + $0x8] sm:$0xff]
  %v333 = vmul.f32 %v276, %v331
  %v334 = vmul.f32 %v277, %v332
  %s335 = scalar_lea.vmem %s1, 368
  %v336 = vld [vmem:[%s335] sm:$0xff]
  %v337 = vld [vmem:[%s335 + $0x8] sm:$0xff]
  %338 = vrot.lane.b32.xlu0 %v276, 127
  %v339 = vpop.permute.xlu0 %338
  %340 = vrot.lane.b32.xlu0 %v277, 127
  %v341 = vpop.permute.xlu0 %340
  %v342 = vsel %vm81, %v339, %v341
  %v343 = vsel %vm81, %v341, %v339
  %v344 = vmul.f32 %v342, %v336
  %v345 = vmul.f32 %v343, %v337
  %s346 = scalar_lea.vmem %s1, 384
  %v347 = vld [vmem:[%s346] sm:$0xff]
  %v348 = vld [vmem:[%s346 + $0x8] sm:$0xff]
  %349 = vrot.lane.b32.xlu0 %v276, 113
  %v350 = vpop.permute.xlu0 %349
  %351 = vrot.lane.b32.xlu0 %v277, 113
  %v352 = vpop.permute.xlu0 %351
  %v353 = vsel %vm93, %v350, %v352
  %v354 = vsel %vm93, %v352, %v350
  %v355 = vmul.f32 %v353, %v347
  %v356 = vmul.f32 %v354, %v348
  %s357 = scalar_lea.vmem %s1, 400
  %v358 = vld [vmem:[%s357] sm:$0xff]
  %v359 = vld [vmem:[%s357 + $0x8] sm:$0xff]
  %360 = vrot.lane.b32.xlu0 %v276, 112
  %v361 = vpop.permute.xlu0 %360
  %362 = vrot.lane.b32.xlu0 %v277, 112
  %v363 = vpop.permute.xlu0 %362
  %v364 = vsel %vm105, %v361, %v363
  %v365 = vsel %vm105, %v363, %v361
  %v366 = vmul.f32 %v364, %v358
  %v367 = vmul.f32 %v365, %v359
  %s368 = scalar_lea.vmem %s1, 416
  %v369 = vld [vmem:[%s368] sm:$0xff]
  %v370 = vld [vmem:[%s368 + $0x8] sm:$0xff]
  %371 = vrot.lane.b32.xlu0 %v276, 111
  %v372 = vpop.permute.xlu0 %371
  %373 = vrot.lane.b32.xlu0 %v277, 111
  %v374 = vpop.permute.xlu0 %373
  %v375 = vsel %vm117, %v372, %v374
  %v376 = vsel %vm117, %v374, %v372
  %v377 = vmul.f32 %v375, %v369
  %v378 = vmul.f32 %v376, %v370
  %v379 = vadd.f32 %v295, %v306
  %v380 = vadd.f32 %v296, %v307
  %v381 = vadd.f32 %v317, %v328
  %v382 = vadd.f32 %v318, %v329
  %v383 = vadd.f32 %v333, %v344
  %v384 = vadd.f32 %v334, %v345
  %v385 = vadd.f32 %v355, %v366
  %v386 = vadd.f32 %v356, %v367
  %v387 = vadd.f32 %v379, %v381
  %v388 = vadd.f32 %v380, %v382
  %v389 = vadd.f32 %v383, %v385
  %v390 = vadd.f32 %v384, %v386
  %v391 = vadd.f32 %v387, %v389
  %v392 = vadd.f32 %v388, %v390
  %v393 = vadd.f32 %v391, %v377
  %v394 = vadd.f32 %v392, %v378
  %s395 = scalar_lea.vmem %s2, 16
  %v396 = vld [vmem:[%s395] sm:$0xff]
  %398 = vset.pattern.permute.xlu0 0
  %399 = vperm.xlu0 %398, %v396
  %v400 = vpop.permute.xlu0 %399
  %v402 = vadd.f32 %v393, %v400
  %v403 = vadd.f32 %v394, %v400
  %v404 = vmax.f32 %v402, 0.0
  %v405 = vmax.f32 %v403, 0.0
  %s406 = scalar_lea.vmem %s1, 432
  %v407 = vld [vmem:[%s406] sm:$0xff]
  %v408 = vld [vmem:[%s406 + $0x8] sm:$0xff]
  %409 = vrot.lane.b32.xlu0 %v284, 51
  %v410 = vpop.permute.xlu0 %409
  %411 = vrot.lane.b32.xlu0 %v285, 51
  %v412 = vpop.permute.xlu0 %411
  %v413 = vsel %vm155, %v410, %v412
  %v414 = vsel %vm155, %v412, %v410
  %v415 = vmul.f32 %v414, %v407
  %v416 = vmul.f32 %v413, %v408
  %s417 = scalar_lea.vmem %s1, 448
  %v418 = vld [vmem:[%s417] sm:$0xff]
  %v419 = vld [vmem:[%s417 + $0x8] sm:$0xff]
  %420 = vrot.lane.b32.xlu0 %v284, 48
  %v421 = vpop.permute.xlu0 %420
  %422 = vrot.lane.b32.xlu0 %v285, 48
  %v423 = vpop.permute.xlu0 %422
  %v424 = vsel %vm167, %v421, %v423
  %v425 = vsel %vm167, %v423, %v421
  %v426 = vmul.f32 %v425, %v418
  %v427 = vmul.f32 %v424, %v419
  %s428 = scalar_lea.vmem %s1, 464
  %v429 = vld [vmem:[%s428] sm:$0xff]
  %v430 = vld [vmem:[%s428 + $0x8] sm:$0xff]
  %431 = vrot.lane.b32.xlu0 %v284, 45
  %v432 = vpop.permute.xlu0 %431
  %433 = vrot.lane.b32.xlu0 %v285, 45
  %v434 = vpop.permute.xlu0 %433
  %v435 = vsel %vm179, %v432, %v434
  %v436 = vsel %vm179, %v434, %v432
  %v437 = vmul.f32 %v436, %v429
  %v438 = vmul.f32 %v435, %v430
  %s439 = scalar_lea.vmem %s1, 480
  %v440 = vld [vmem:[%s439] sm:$0xff]
  %v441 = vld [vmem:[%s439 + $0x8] sm:$0xff]
  %442 = vrot.lane.b32.xlu0 %v284, 3
  %v443 = vpop.permute.xlu0 %442
  %444 = vrot.lane.b32.xlu0 %v285, 3
  %v445 = vpop.permute.xlu0 %444
  %v446 = vsel %vm191, %v443, %v445
  %v447 = vsel %vm191, %v445, %v443
  %v448 = vmul.f32 %v447, %v440
  %v449 = vmul.f32 %v446, %v441
  %s450 = scalar_lea.vmem %s1, 496
  %v451 = vld [vmem:[%s450] sm:$0xff]
  %v452 = vld [vmem:[%s450 + $0x8] sm:$0xff]
  %v453 = vmul.f32 %v284, %v451
  %v454 = vmul.f32 %v285, %v452
  %s455 = scalar_lea.vmem %s1, 512
  %v456 = vld [vmem:[%s455] sm:$0xff]
  %v457 = vld [vmem:[%s455 + $0x8] sm:$0xff]
  %458 = vrot.lane.b32.xlu0 %v284, 125
  %v459 = vpop.permute.xlu0 %458
  %460 = vrot.lane.b32.xlu0 %v285, 125
  %v461 = vpop.permute.xlu0 %460
  %v462 = vsel %vm208, %v459, %v461
  %v463 = vsel %vm208, %v461, %v459
  %v464 = vmul.f32 %v462, %v456
  %v465 = vmul.f32 %v463, %v457
  %s466 = scalar_lea.vmem %s1, 528
  %v467 = vld [vmem:[%s466] sm:$0xff]
  %v468 = vld [vmem:[%s466 + $0x8] sm:$0xff]
  %469 = vrot.lane.b32.xlu0 %v284, 83
  %v470 = vpop.permute.xlu0 %469
  %471 = vrot.lane.b32.xlu0 %v285, 83
  %v472 = vpop.permute.xlu0 %471
  %v473 = vsel %vm220, %v470, %v472
  %v474 = vsel %vm220, %v472, %v470
  %v475 = vmul.f32 %v473, %v467
  %v476 = vmul.f32 %v474, %v468
  %s477 = scalar_lea.vmem %s1, 544
  %v478 = vld [vmem:[%s477] sm:$0xff]
  %v479 = vld [vmem:[%s477 + $0x8] sm:$0xff]
  %480 = vrot.lane.b32.xlu0 %v284, 80
  %v481 = vpop.permute.xlu0 %480
  %482 = vrot.lane.b32.xlu0 %v285, 80
  %v483 = vpop.permute.xlu0 %482
  %v484 = vsel %vm232, %v481, %v483
  %v485 = vsel %vm232, %v483, %v481
  %v486 = vmul.f32 %v484, %v478
  %v487 = vmul.f32 %v485, %v479
  %s488 = scalar_lea.vmem %s1, 560
  %v489 = vld [vmem:[%s488] sm:$0xff]
  %v490 = vld [vmem:[%s488 + $0x8] sm:$0xff]
  %491 = vrot.lane.b32.xlu0 %v284, 77
  %v492 = vpop.permute.xlu0 %491
  %493 = vrot.lane.b32.xlu0 %v285, 77
  %v494 = vpop.permute.xlu0 %493
  %v495 = vsel %vm244, %v492, %v494
  %v496 = vsel %vm244, %v494, %v492
  %v497 = vmul.f32 %v495, %v489
  %v498 = vmul.f32 %v496, %v490
  %v499 = vadd.f32 %v415, %v426
  %v500 = vadd.f32 %v416, %v427
  %v501 = vadd.f32 %v437, %v448
  %v502 = vadd.f32 %v438, %v449
  %v503 = vadd.f32 %v453, %v464
  %v504 = vadd.f32 %v454, %v465
  %v505 = vadd.f32 %v475, %v486
  %v506 = vadd.f32 %v476, %v487
  %v507 = vadd.f32 %v499, %v501
  %v508 = vadd.f32 %v500, %v502
  %v509 = vadd.f32 %v503, %v505
  %v510 = vadd.f32 %v504, %v506
  %v511 = vadd.f32 %v507, %v509
  %v512 = vadd.f32 %v508, %v510
  %v513 = vadd.f32 %v511, %v497
  %v514 = vadd.f32 %v512, %v498
  %s515 = scalar_lea.vmem %s2, 24
  %v516 = vld [vmem:[%s515] sm:$0xff]
  %518 = vset.pattern.permute.xlu0 0
  %519 = vperm.xlu0 %518, %v516
  %v520 = vpop.permute.xlu0 %519
  %v522 = vadd.f32 %v513, %v520
  %v523 = vadd.f32 %v514, %v520
  %v524 = vmax.f32 %v522, 0.0
  %v525 = vmax.f32 %v523, 0.0
  %v526 = vadd.f32 %v404, %v524
  %v527 = vadd.f32 %v405, %v525
  %v528 = vadd.f32 %v526, %v14
  %v529 = vadd.f32 %v527, %v15
  %530 = vst [vmem:[%s3] sm:$0xff] %v528
  %531 = vst [vmem:[%s3 + $0x8] sm:$0xff] %v529
  // Predicated region
  $region14: #{butterfly_conv_v2.1} parent=0 // pred_check
    _
  $region15: #{butterfly_conv_v2.1} parent=0 // pred_check_branch
    %533 = sbr.rel (0) target = $region17
  $region16: #{butterfly_conv_v2.1} parent=0 // pred_region
    _
  $region17: #{butterfly_conv_v2.1} parent=0 // pred_fallthru
    _
  // Predicated region
  $region18: #{butterfly_conv_v2.1} parent=0 // pred_check
    _
  $region19: #{butterfly_conv_v2.1} parent=0 // pred_check_branch
    %535 = sbr.rel (0) target = $region21
  $region20: #{butterfly_conv_v2.1} parent=0 // pred_region
    _
  $region21: #{butterfly_conv_v2.1} parent=0 // pred_fallthru
    _

</llo_original>
